<compile_context>
chip_gen: v6e
topology: v6e:2x2x1
jax: 0.10.0
libtpu: 0.0.40
codegen_flags: <defaults>
</compile_context>

<pallas_src>
import numpy as np
import jax
import jax.numpy as jnp
from jax import lax
from jax.experimental import pallas as pl
from jax.experimental.pallas import tpu as pltpu

N_BATCH = 8
C_IN, H_IN, W_IN = 3, 8, 8
D_IN = C_IN * H_IN * W_IN        # 192
D_FEAT = 32
N_CLASSES = 16
KNN = 5
BOUND_LAMBDA = 1.0
MAX_STEPS = 100
UNROLL = 4                                        # y-updates per while iteration
MAX_GROUPS = (MAX_STEPS + UNROLL - 1) // UNROLL   # 25 groups -> <=100 updates


def lame_kernel(x_ref, w1_ref, w12_ref, y_ref):
    """Fused backbone + affinity + laplacian_optimization."""
    x = x_ref[...]                                                            # (N, D_IN)
    # Independent preamble matmuls (w12 precomputed in the wrapper).
    feats = jnp.dot(x, w1_ref[...], preferred_element_type=jnp.float32)      # (N, D_FEAT)
    logits = jnp.dot(x, w12_ref[...], preferred_element_type=jnp.float32)    # (N, C)

    # unary = -log(softmax(logits, dim=1) + 1e-10)   (one-time: exact divide)
    m0 = jnp.max(logits, axis=-1, keepdims=True)
    e0 = jnp.exp(logits - m0)
    p0 = e0 / jnp.sum(e0, axis=-1, keepdims=True)
    unary = -jnp.log(p0 + 1e-10)

    # F.normalize(features, p=2, dim=-1)
    nrm = jnp.sqrt(jnp.sum(feats * feats, axis=-1, keepdims=True))
    fn = feats / jnp.maximum(nrm, 1e-12)

    # Gram via dot_general contracting last dims (no transpose materialized);
    # unit rows => d^2_ij = 2 - 2 <f_i, f_j>.
    gram = lax.dot_general(fn, fn, (((1,), (1,)), ((), ())),
                           preferred_element_type=jnp.float32)               # (N, N)
    d2 = jnp.maximum(2.0 - 2.0 * gram, 0.0)

    # k-th smallest squared distance per row (includes self, matching torch.topk
    # over the full row).  KNN-1 masked-min passes; ties broken by first index
    # (exact-equality compare against rmin from the same array is intentional).
    n = d2.shape[0]
    k_eff = min(KNN, n)
    col = lax.broadcasted_iota(jnp.int32, d2.shape, 1)
    work = d2
    for _ in range(k_eff - 1):
        rmin = jnp.min(work, axis=-1, keepdims=True)
        cand = jnp.where(work == rmin, col, n)
        first = jnp.min(cand, axis=-1, keepdims=True)
        work = jnp.where(col == first, jnp.float32(1e30), work)
    kth_d2 = jnp.min(work, axis=-1, keepdims=True)                           # (N, 1)

    sigma = jnp.mean(jnp.sqrt(kth_d2))
    neg_inv_2s2 = -0.5 / (sigma * sigma)
    kernel_mat = jnp.exp(d2 * neg_inv_2s2)                                   # rbf affinity

    # --- laplacian_optimization -------------------------------------------
    def y_update(y):
        pairwise = BOUND_LAMBDA * jnp.dot(kernel_mat, y,
                                          preferred_element_type=jnp.float32)
        z = pairwise - unary
        m = jnp.max(z, axis=-1, keepdims=True)
        e = jnp.exp(z - m)
        s = jnp.sum(e, axis=-1, keepdims=True)
        y_new = e * pl.reciprocal(s, approx=True)        # EUP, off the VPU path
        return y_new, m, s, pairwise

    # Y0 = softmax(-unary)
    mi = jnp.max(-unary, axis=-1, keepdims=True)
    ei = jnp.exp(-unary - mi)
    y0 = ei * pl.reciprocal(jnp.sum(ei, axis=-1, keepdims=True), approx=True)

    def cond(carry):
        return carry[3]

    def body(carry):
        g, y, old_e, _ = carry
        # UNROLL-1 plain updates: no energy reduce, no scalar move, no branch.
        for _ in range(UNROLL - 1):
            y, _, _, _ = y_update(y)
        # Last update of the group carries the convergence test.
        y_new, m, s, pairwise = y_update(y)
        if BOUND_LAMBDA == 1.0:
            # Exact algebra for lambda == 1 (rows of y_new sum to 1):
            #   E = sum(unary*Y - pairwise*Y + Y*log Y) = -sum_rows(m + log s)
            e_val = -jnp.sum(m + jnp.log(s))
        else:
            # General fallback keeps the reference's double-lambda quirk.
            log_y = (pairwise - unary) - m - jnp.log(s)
            e_val = jnp.sum(unary * y_new - BOUND_LAMBDA * pairwise * y_new
                            + y_new * log_y)
        conv = (g >= 1) & (jnp.abs(e_val - old_e) <= 1e-8 * jnp.abs(old_e))
        keep = jnp.logical_not(conv) & (g + 1 < MAX_GROUPS)
        return (g + 1, y_new, e_val, keep)

    _, y_fin, _, _ = lax.while_loop(
        cond, body,
        (jnp.int32(0), y0, jnp.float32(jnp.inf), jnp.array(True)))

    # One exact renormalization at write-out (undoes approx-reciprocal drift).
    y_ref[...] = y_fin / jnp.sum(y_fin, axis=-1, keepdims=True)


@jax.jit
def lame_forward(x, w1, w2):
    n = x.shape[0]
    x_flat = x.reshape(n, -1).astype(jnp.float32)
    # Precompute w12 so feats and logits are independent MXU dots in-kernel.
    w12 = jnp.dot(w1, w2, preferred_element_type=jnp.float32)
    return pl.pallas_call(
        lame_kernel,
        out_shape=jax.ShapeDtypeStruct((n, N_CLASSES), jnp.float32),
        in_specs=[pl.BlockSpec(memory_space=pltpu.MemorySpace.VMEM)] * 3,
        out_specs=pl.BlockSpec(memory_space=pltpu.MemorySpace.VMEM),
    )(x_flat, w1, w12)


def lame_reference_np(x, w1, w2):
    """Pure numpy reference mirroring the PyTorch code (with real early break)."""
    x = x.astype(np.float32)
    n = x.shape[0]
    feats = x.reshape(n, -1) @ w1
    logits = feats @ w2

    def softmax(z):
        z = z - z.max(-1, keepdims=True)
        e = np.exp(z)
        return e / e.sum(-1, keepdims=True)

    unary = -np.log(softmax(logits) + 1e-10)
    fn = feats / np.maximum(np.sqrt((feats ** 2).sum(-1, keepdims=True)), 1e-12)
    dist = np.sqrt(((fn[None, :, :] - fn[:, None, :]) ** 2).sum(-1))
    kth = np.sort(dist, axis=-1)[:, min(KNN, n) - 1]
    sigma = kth.mean()
    kernel = np.exp(-dist ** 2 / (2.0 * sigma ** 2))

    Y = softmax(-unary)
    old_e = float("inf")
    for i in range(MAX_STEPS):
        pairwise = BOUND_LAMBDA * (kernel @ Y)
        Y = softmax(-unary + pairwise)
        e = float((unary * Y - BOUND_LAMBDA * pairwise * Y
                   + Y * np.log(np.clip(Y, 1e-20, None))).sum())
        if i > 1 and abs(e - old_e) <= 1e-8 * abs(old_e):
            break
        old_e = e
    return Y


if __name__ == "__main__":
    key = jax.random.PRNGKey(0)
    kx, k1, k2 = jax.random.split(key, 3)
    x = jax.random.normal(kx, (N_BATCH, C_IN, H_IN, W_IN), jnp.float32)
    w1 = jax.random.normal(k1, (D_IN, D_FEAT), jnp.float32) * (1.0 / np.sqrt(D_IN))
    w2 = jax.random.normal(k2, (D_FEAT, N_CLASSES), jnp.float32) * (1.0 / np.sqrt(D_FEAT))

    y = jax.block_until_ready(lame_forward(x, w1, w2))

    y_np = np.asarray(y)
    y_ref = lame_reference_np(np.asarray(x), np.asarray(w1), np.asarray(w2))

    assert np.all(np.isfinite(y_np)), "non-finite outputs"
    assert np.allclose(y_np.sum(-1), 1.0, atol=1e-4), "rows must sum to 1"
    max_err = float(np.max(np.abs(y_np - y_ref)))
    assert max_err < 1e-2, f"mismatch vs reference: {max_err}"

    print("KERNEL_OK")
</pallas_src>

<mosaic_0001>
module attributes {stable_mosaic.version = 11 : i64} {
  func.func @lame_kernel(%arg0: memref<8x192xf32, #tpu.memory_space<vmem>>, %arg1: memref<192x32xf32, #tpu.memory_space<vmem>>, %arg2: memref<192x16xf32, #tpu.memory_space<vmem>>, %arg3: memref<8x16xf32, #tpu.memory_space<vmem>>) attributes {dimension_semantics = [], scalar_prefetch = 0 : i64, scratch_operands = 0 : i64, tpu.core_type = #tpu.core_type<tc>} {
    %c0 = arith.constant 0 : index
    %c0_0 = arith.constant 0 : index
    %0 = vector.load %arg0[%c0, %c0_0] : memref<8x192xf32, #tpu.memory_space<vmem>>, vector<8x192xf32>
    %c0_1 = arith.constant 0 : index
    %c0_2 = arith.constant 0 : index
    %1 = vector.load %arg1[%c0_1, %c0_2] : memref<192x32xf32, #tpu.memory_space<vmem>>, vector<192x32xf32>
    %cst = arith.constant dense<0.000000e+00> : vector<8x32xf32>
    %2 = tpu.matmul %0, %1, %cst {dimension_numbers = #tpu.dot_dimension_numbers<[1], [0], [0], [1], [0, 0, 1, 1], [], []>} : vector<8x192xf32>, vector<192x32xf32>, vector<8x32xf32> -> vector<8x32xf32>
    %c0_3 = arith.constant 0 : index
    %c0_4 = arith.constant 0 : index
    %3 = vector.load %arg2[%c0_3, %c0_4] : memref<192x16xf32, #tpu.memory_space<vmem>>, vector<192x16xf32>
    %cst_5 = arith.constant dense<0.000000e+00> : vector<8x16xf32>
    %4 = tpu.matmul %0, %3, %cst_5 {dimension_numbers = #tpu.dot_dimension_numbers<[1], [0], [0], [1], [0, 0, 1, 1], [], []>} : vector<8x192xf32>, vector<192x16xf32>, vector<8x16xf32> -> vector<8x16xf32>
    %cst_6 = arith.constant dense<0xFF800000> : vector<8xf32>
    %5 = vector.multi_reduction <maximumf>, %4, %cst_6 [1] : vector<8x16xf32> to vector<8xf32>
    %6 = vector.shape_cast %5 : vector<8xf32> to vector<8x1xf32>
    %7 = vector.broadcast %6 : vector<8x1xf32> to vector<8x16xf32>
    %8 = arith.subf %4, %7 : vector<8x16xf32>
    %9 = math.exp %8 : vector<8x16xf32>
    %cst_7 = arith.constant dense<0.000000e+00> : vector<8xf32>
    %10 = vector.multi_reduction <add>, %9, %cst_7 [1] : vector<8x16xf32> to vector<8xf32>
    %11 = vector.shape_cast %10 : vector<8xf32> to vector<8x1xf32>
    %12 = vector.broadcast %11 : vector<8x1xf32> to vector<8x16xf32>
    %13 = arith.divf %9, %12 : vector<8x16xf32>
    %cst_8 = arith.constant 1.000000e-10 : f32
    %14 = vector.broadcast %cst_8 : f32 to vector<8x16xf32>
    %15 = arith.addf %13, %14 : vector<8x16xf32>
    %16 = math.log %15 : vector<8x16xf32>
    %cst_9 = arith.constant 0.000000e+00 : f32
    %17 = vector.broadcast %cst_9 : f32 to vector<8x16xf32>
    %18 = arith.subf %17, %16 : vector<8x16xf32>
    %19 = arith.mulf %2, %2 : vector<8x32xf32>
    %cst_10 = arith.constant dense<0.000000e+00> : vector<8xf32>
    %20 = vector.multi_reduction <add>, %19, %cst_10 [1] : vector<8x32xf32> to vector<8xf32>
    %21 = vector.shape_cast %20 : vector<8xf32> to vector<8x1xf32>
    %22 = math.sqrt %21 : vector<8x1xf32>
    %cst_11 = arith.constant 9.99999996E-13 : f32
    %23 = vector.broadcast %cst_11 : f32 to vector<8x1xf32>
    %24 = arith.maximumf %22, %23 : vector<8x1xf32>
    %25 = vector.broadcast %24 : vector<8x1xf32> to vector<8x32xf32>
    %26 = arith.divf %2, %25 : vector<8x32xf32>
    %cst_12 = arith.constant dense<0.000000e+00> : vector<8x8xf32>
    %27 = tpu.matmul %26, %26, %cst_12 {dimension_numbers = #tpu.dot_dimension_numbers<[1], [1], [0], [0], [0, 0, 1, 0], [], []>} : vector<8x32xf32>, vector<8x32xf32>, vector<8x8xf32> -> vector<8x8xf32>
    %cst_13 = arith.constant 2.000000e+00 : f32
    %28 = vector.broadcast %cst_13 : f32 to vector<8x8xf32>
    %29 = arith.mulf %28, %27 : vector<8x8xf32>
    %cst_14 = arith.constant 2.000000e+00 : f32
    %30 = vector.broadcast %cst_14 : f32 to vector<8x8xf32>
    %31 = arith.subf %30, %29 : vector<8x8xf32>
    %cst_15 = arith.constant 0.000000e+00 : f32
    %32 = vector.broadcast %cst_15 : f32 to vector<8x8xf32>
    %33 = arith.maximumf %31, %32 : vector<8x8xf32>
    %34 = tpu.iota {dimensions = array<i32: 1>} : vector<8x8xi32>
    %cst_16 = arith.constant dense<0x7F800000> : vector<8xf32>
    %35 = vector.multi_reduction <minimumf>, %33, %cst_16 [1] : vector<8x8xf32> to vector<8xf32>
    %36 = vector.shape_cast %35 : vector<8xf32> to vector<8x1xf32>
    %37 = vector.broadcast %36 : vector<8x1xf32> to vector<8x8xf32>
    %38 = arith.cmpf oeq, %33, %37 : vector<8x8xf32>
    %c8_i32 = arith.constant 8 : i32
    %39 = vector.broadcast %c8_i32 : i32 to vector<8x8xi32>
    %40 = arith.select %38, %34, %39 : vector<8x8xi1>, vector<8x8xi32>
    %cst_17 = arith.constant dense<2147483647> : vector<8xi32>
    %41 = vector.multi_reduction <minsi>, %40, %cst_17 [1] : vector<8x8xi32> to vector<8xi32>
    %42 = vector.shape_cast %41 : vector<8xi32> to vector<8x1xi32>
    %43 = vector.broadcast %42 : vector<8x1xi32> to vector<8x8xi32>
    %44 = arith.cmpi eq, %34, %43 : vector<8x8xi32>
    %cst_18 = arith.constant 1.000000e+30 : f32
    %45 = vector.broadcast %cst_18 : f32 to vector<8x8xf32>
    %46 = arith.select %44, %45, %33 : vector<8x8xi1>, vector<8x8xf32>
    %cst_19 = arith.constant dense<0x7F800000> : vector<8xf32>
    %47 = vector.multi_reduction <minimumf>, %46, %cst_19 [1] : vector<8x8xf32> to vector<8xf32>
    %48 = vector.shape_cast %47 : vector<8xf32> to vector<8x1xf32>
    %49 = vector.broadcast %48 : vector<8x1xf32> to vector<8x8xf32>
    %50 = arith.cmpf oeq, %46, %49 : vector<8x8xf32>
    %c8_i32_20 = arith.constant 8 : i32
    %51 = vector.broadcast %c8_i32_20 : i32 to vector<8x8xi32>
    %52 = arith.select %50, %34, %51 : vector<8x8xi1>, vector<8x8xi32>
    %cst_21 = arith.constant dense<2147483647> : vector<8xi32>
    %53 = vector.multi_reduction <minsi>, %52, %cst_21 [1] : vector<8x8xi32> to vector<8xi32>
    %54 = vector.shape_cast %53 : vector<8xi32> to vector<8x1xi32>
    %55 = vector.broadcast %54 : vector<8x1xi32> to vector<8x8xi32>
    %56 = arith.cmpi eq, %34, %55 : vector<8x8xi32>
    %cst_22 = arith.constant 1.000000e+30 : f32
    %57 = vector.broadcast %cst_22 : f32 to vector<8x8xf32>
    %58 = arith.select %56, %57, %46 : vector<8x8xi1>, vector<8x8xf32>
    %cst_23 = arith.constant dense<0x7F800000> : vector<8xf32>
    %59 = vector.multi_reduction <minimumf>, %58, %cst_23 [1] : vector<8x8xf32> to vector<8xf32>
    %60 = vector.shape_cast %59 : vector<8xf32> to vector<8x1xf32>
    %61 = vector.broadcast %60 : vector<8x1xf32> to vector<8x8xf32>
    %62 = arith.cmpf oeq, %58, %61 : vector<8x8xf32>
    %c8_i32_24 = arith.constant 8 : i32
    %63 = vector.broadcast %c8_i32_24 : i32 to vector<8x8xi32>
    %64 = arith.select %62, %34, %63 : vector<8x8xi1>, vector<8x8xi32>
    %cst_25 = arith.constant dense<2147483647> : vector<8xi32>
    %65 = vector.multi_reduction <minsi>, %64, %cst_25 [1] : vector<8x8xi32> to vector<8xi32>
    %66 = vector.shape_cast %65 : vector<8xi32> to vector<8x1xi32>
    %67 = vector.broadcast %66 : vector<8x1xi32> to vector<8x8xi32>
    %68 = arith.cmpi eq, %34, %67 : vector<8x8xi32>
    %cst_26 = arith.constant 1.000000e+30 : f32
    %69 = vector.broadcast %cst_26 : f32 to vector<8x8xf32>
    %70 = arith.select %68, %69, %58 : vector<8x8xi1>, vector<8x8xf32>
    %cst_27 = arith.constant dense<0x7F800000> : vector<8xf32>
    %71 = vector.multi_reduction <minimumf>, %70, %cst_27 [1] : vector<8x8xf32> to vector<8xf32>
    %72 = vector.shape_cast %71 : vector<8xf32> to vector<8x1xf32>
    %73 = vector.broadcast %72 : vector<8x1xf32> to vector<8x8xf32>
    %74 = arith.cmpf oeq, %70, %73 : vector<8x8xf32>
    %c8_i32_28 = arith.constant 8 : i32
    %75 = vector.broadcast %c8_i32_28 : i32 to vector<8x8xi32>
    %76 = arith.select %74, %34, %75 : vector<8x8xi1>, vector<8x8xi32>
    %cst_29 = arith.constant dense<2147483647> : vector<8xi32>
    %77 = vector.multi_reduction <minsi>, %76, %cst_29 [1] : vector<8x8xi32> to vector<8xi32>
    %78 = vector.shape_cast %77 : vector<8xi32> to vector<8x1xi32>
    %79 = vector.broadcast %78 : vector<8x1xi32> to vector<8x8xi32>
    %80 = arith.cmpi eq, %34, %79 : vector<8x8xi32>
    %cst_30 = arith.constant 1.000000e+30 : f32
    %81 = vector.broadcast %cst_30 : f32 to vector<8x8xf32>
    %82 = arith.select %80, %81, %70 : vector<8x8xi1>, vector<8x8xf32>
    %cst_31 = arith.constant dense<0x7F800000> : vector<8xf32>
    %83 = vector.multi_reduction <minimumf>, %82, %cst_31 [1] : vector<8x8xf32> to vector<8xf32>
    %84 = vector.shape_cast %83 : vector<8xf32> to vector<8x1xf32>
    %85 = math.sqrt %84 : vector<8x1xf32>
    %86 = vector.shape_cast %85 : vector<8x1xf32> to vector<1x8x1xf32>
    %cst_32 = arith.constant dense<0.000000e+00> : vector<1xf32>
    %87 = vector.multi_reduction <add>, %86, %cst_32 [1, 2] : vector<1x8x1xf32> to vector<1xf32>
    %88 = vector.shape_cast %87 : vector<1xf32> to vector<1x1x1xf32>
    %89 = vector.extract %88[0, 0, 0] : f32 from vector<1x1x1xf32>
    %cst_33 = arith.constant 8.000000e+00 : f32
    %90 = arith.divf %89, %cst_33 : f32
    %91 = arith.mulf %90, %90 : f32
    %cst_34 = arith.constant -5.000000e-01 : f32
    %92 = arith.divf %cst_34, %91 : f32
    %93 = vector.broadcast %92 : f32 to vector<8x8xf32>
    %94 = arith.mulf %33, %93 : vector<8x8xf32>
    %95 = math.exp %94 : vector<8x8xf32>
    %cst_35 = arith.constant 0.000000e+00 : f32
    %96 = vector.broadcast %cst_35 : f32 to vector<8x16xf32>
    %97 = arith.subf %96, %18 : vector<8x16xf32>
    %cst_36 = arith.constant dense<0xFF800000> : vector<8xf32>
    %98 = vector.multi_reduction <maximumf>, %97, %cst_36 [1] : vector<8x16xf32> to vector<8xf32>
    %99 = vector.shape_cast %98 : vector<8xf32> to vector<8x1xf32>
    %cst_37 = arith.constant 0.000000e+00 : f32
    %100 = vector.broadcast %cst_37 : f32 to vector<8x16xf32>
    %101 = arith.subf %100, %18 : vector<8x16xf32>
    %102 = vector.broadcast %99 : vector<8x1xf32> to vector<8x16xf32>
    %103 = arith.subf %101, %102 : vector<8x16xf32>
    %104 = math.exp %103 : vector<8x16xf32>
    %cst_38 = arith.constant dense<0.000000e+00> : vector<8xf32>
    %105 = vector.multi_reduction <add>, %104, %cst_38 [1] : vector<8x16xf32> to vector<8xf32>
    %106 = vector.shape_cast %105 : vector<8xf32> to vector<8x1xf32>
    %107 = tpu.reciprocal %106 {approx = true} : vector<8x1xf32> -> vector<8x1xf32>
    %108 = vector.broadcast %107 : vector<8x1xf32> to vector<8x16xf32>
    %109 = arith.mulf %104, %108 : vector<8x16xf32>
    %c0_i32 = arith.constant 0 : i32
    %cst_39 = arith.constant 0x7F800000 : f32
    %true = arith.constant true
    %110:4 = scf.while (%arg4 = %c0_i32, %arg5 = %109, %arg6 = %cst_39, %arg7 = %true) : (i32, vector<8x16xf32>, f32, i1) -> (i32, vector<8x16xf32>, f32, i1) {
      scf.condition(%arg7) %arg4, %arg5, %arg6, %arg7 : i32, vector<8x16xf32>, f32, i1
    } do {
    ^bb0(%arg4: i32, %arg5: vector<8x16xf32>, %arg6: f32, %arg7: i1):
      %cst_43 = arith.constant dense<0.000000e+00> : vector<8x16xf32>
      %116 = tpu.matmul %95, %arg5, %cst_43 {dimension_numbers = #tpu.dot_dimension_numbers<[1], [0], [0], [1], [0, 0, 1, 1], [], []>} : vector<8x8xf32>, vector<8x16xf32>, vector<8x16xf32> -> vector<8x16xf32>
      %cst_44 = arith.constant 1.000000e+00 : f32
      %117 = vector.broadcast %cst_44 : f32 to vector<8x16xf32>
      %118 = arith.mulf %117, %116 : vector<8x16xf32>
      %119 = arith.subf %118, %18 : vector<8x16xf32>
      %cst_45 = arith.constant dense<0xFF800000> : vector<8xf32>
      %120 = vector.multi_reduction <maximumf>, %119, %cst_45 [1] : vector<8x16xf32> to vector<8xf32>
      %121 = vector.shape_cast %120 : vector<8xf32> to vector<8x1xf32>
      %122 = vector.broadcast %121 : vector<8x1xf32> to vector<8x16xf32>
      %123 = arith.subf %119, %122 : vector<8x16xf32>
      %124 = math.exp %123 : vector<8x16xf32>
      %cst_46 = arith.constant dense<0.000000e+00> : vector<8xf32>
      %125 = vector.multi_reduction <add>, %124, %cst_46 [1] : vector<8x16xf32> to vector<8xf32>
      %126 = vector.shape_cast %125 : vector<8xf32> to vector<8x1xf32>
      %127 = tpu.reciprocal %126 {approx = true} : vector<8x1xf32> -> vector<8x1xf32>
      %128 = vector.broadcast %127 : vector<8x1xf32> to vector<8x16xf32>
      %129 = arith.mulf %124, %128 : vector<8x16xf32>
      %cst_47 = arith.constant dense<0.000000e+00> : vector<8x16xf32>
      %130 = tpu.matmul %95, %129, %cst_47 {dimension_numbers = #tpu.dot_dimension_numbers<[1], [0], [0], [1], [0, 0, 1, 1], [], []>} : vector<8x8xf32>, vector<8x16xf32>, vector<8x16xf32> -> vector<8x16xf32>
      %cst_48 = arith.constant 1.000000e+00 : f32
      %131 = vector.broadcast %cst_48 : f32 to vector<8x16xf32>
      %132 = arith.mulf %131, %130 : vector<8x16xf32>
      %133 = arith.subf %132, %18 : vector<8x16xf32>
      %cst_49 = arith.constant dense<0xFF800000> : vector<8xf32>
      %134 = vector.multi_reduction <maximumf>, %133, %cst_49 [1] : vector<8x16xf32> to vector<8xf32>
      %135 = vector.shape_cast %134 : vector<8xf32> to vector<8x1xf32>
      %136 = vector.broadcast %135 : vector<8x1xf32> to vector<8x16xf32>
      %137 = arith.subf %133, %136 : vector<8x16xf32>
      %138 = math.exp %137 : vector<8x16xf32>
      %cst_50 = arith.constant dense<0.000000e+00> : vector<8xf32>
      %139 = vector.multi_reduction <add>, %138, %cst_50 [1] : vector<8x16xf32> to vector<8xf32>
      %140 = vector.shape_cast %139 : vector<8xf32> to vector<8x1xf32>
      %141 = tpu.reciprocal %140 {approx = true} : vector<8x1xf32> -> vector<8x1xf32>
      %142 = vector.broadcast %141 : vector<8x1xf32> to vector<8x16xf32>
      %143 = arith.mulf %138, %142 : vector<8x16xf32>
      %cst_51 = arith.constant dense<0.000000e+00> : vector<8x16xf32>
      %144 = tpu.matmul %95, %143, %cst_51 {dimension_numbers = #tpu.dot_dimension_numbers<[1], [0], [0], [1], [0, 0, 1, 1], [], []>} : vector<8x8xf32>, vector<8x16xf32>, vector<8x16xf32> -> vector<8x16xf32>
      %cst_52 = arith.constant 1.000000e+00 : f32
      %145 = vector.broadcast %cst_52 : f32 to vector<8x16xf32>
      %146 = arith.mulf %145, %144 : vector<8x16xf32>
      %147 = arith.subf %146, %18 : vector<8x16xf32>
      %cst_53 = arith.constant dense<0xFF800000> : vector<8xf32>
      %148 = vector.multi_reduction <maximumf>, %147, %cst_53 [1] : vector<8x16xf32> to vector<8xf32>
      %149 = vector.shape_cast %148 : vector<8xf32> to vector<8x1xf32>
      %150 = vector.broadcast %149 : vector<8x1xf32> to vector<8x16xf32>
      %151 = arith.subf %147, %150 : vector<8x16xf32>
      %152 = math.exp %151 : vector<8x16xf32>
      %cst_54 = arith.constant dense<0.000000e+00> : vector<8xf32>
      %153 = vector.multi_reduction <add>, %152, %cst_54 [1] : vector<8x16xf32> to vector<8xf32>
      %154 = vector.shape_cast %153 : vector<8xf32> to vector<8x1xf32>
      %155 = tpu.reciprocal %154 {approx = true} : vector<8x1xf32> -> vector<8x1xf32>
      %156 = vector.broadcast %155 : vector<8x1xf32> to vector<8x16xf32>
      %157 = arith.mulf %152, %156 : vector<8x16xf32>
      %cst_55 = arith.constant dense<0.000000e+00> : vector<8x16xf32>
      %158 = tpu.matmul %95, %157, %cst_55 {dimension_numbers = #tpu.dot_dimension_numbers<[1], [0], [0], [1], [0, 0, 1, 1], [], []>} : vector<8x8xf32>, vector<8x16xf32>, vector<8x16xf32> -> vector<8x16xf32>
      %cst_56 = arith.constant 1.000000e+00 : f32
      %159 = vector.broadcast %cst_56 : f32 to vector<8x16xf32>
      %160 = arith.mulf %159, %158 : vector<8x16xf32>
      %161 = arith.subf %160, %18 : vector<8x16xf32>
      %cst_57 = arith.constant dense<0xFF800000> : vector<8xf32>
      %162 = vector.multi_reduction <maximumf>, %161, %cst_57 [1] : vector<8x16xf32> to vector<8xf32>
      %163 = vector.shape_cast %162 : vector<8xf32> to vector<8x1xf32>
      %164 = vector.broadcast %163 : vector<8x1xf32> to vector<8x16xf32>
      %165 = arith.subf %161, %164 : vector<8x16xf32>
      %166 = math.exp %165 : vector<8x16xf32>
      %cst_58 = arith.constant dense<0.000000e+00> : vector<8xf32>
      %167 = vector.multi_reduction <add>, %166, %cst_58 [1] : vector<8x16xf32> to vector<8xf32>
      %168 = vector.shape_cast %167 : vector<8xf32> to vector<8x1xf32>
      %169 = tpu.reciprocal %168 {approx = true} : vector<8x1xf32> -> vector<8x1xf32>
      %170 = vector.broadcast %169 : vector<8x1xf32> to vector<8x16xf32>
      %171 = arith.mulf %166, %170 : vector<8x16xf32>
      %172 = math.log %168 : vector<8x1xf32>
      %173 = arith.addf %163, %172 : vector<8x1xf32>
      %174 = vector.shape_cast %173 : vector<8x1xf32> to vector<1x8x1xf32>
      %cst_59 = arith.constant dense<0.000000e+00> : vector<1xf32>
      %175 = vector.multi_reduction <add>, %174, %cst_59 [1, 2] : vector<1x8x1xf32> to vector<1xf32>
      %176 = vector.shape_cast %175 : vector<1xf32> to vector<1x1x1xf32>
      %177 = vector.extract %176[0, 0, 0] : f32 from vector<1x1x1xf32>
      %cst_60 = arith.constant 0.000000e+00 : f32
      %178 = arith.subf %cst_60, %177 : f32
      %c1_i32 = arith.constant 1 : i32
      %179 = arith.cmpi sge, %arg4, %c1_i32 : i32
      %180 = arith.subf %178, %arg6 : f32
      %181 = math.absf %180 : f32
      %182 = math.absf %arg6 : f32
      %cst_61 = arith.constant 9.99999993E-9 : f32
      %183 = arith.mulf %cst_61, %182 : f32
      %184 = arith.cmpf ole, %181, %183 : f32
      %185 = arith.andi %179, %184 : i1
      %true_62 = arith.constant true
      %186 = arith.xori %185, %true_62 : i1
      %c1_i32_63 = arith.constant 1 : i32
      %187 = arith.addi %arg4, %c1_i32_63 : i32
      %c25_i32 = arith.constant 25 : i32
      %188 = arith.cmpi slt, %187, %c25_i32 : i32
      %189 = arith.andi %186, %188 : i1
      %c1_i32_64 = arith.constant 1 : i32
      %190 = arith.addi %arg4, %c1_i32_64 : i32
      scf.yield %190, %171, %178, %189 : i32, vector<8x16xf32>, f32, i1
    }
    %cst_40 = arith.constant dense<0.000000e+00> : vector<8xf32>
    %111 = vector.multi_reduction <add>, %110#1, %cst_40 [1] : vector<8x16xf32> to vector<8xf32>
    %112 = vector.shape_cast %111 : vector<8xf32> to vector<8x1xf32>
    %113 = vector.broadcast %112 : vector<8x1xf32> to vector<8x16xf32>
    %114 = arith.divf %110#1, %113 : vector<8x16xf32>
    %c0_41 = arith.constant 0 : index
    %c0_42 = arith.constant 0 : index
    %115 = vector.load %arg3[%c0_41, %c0_42] : memref<8x16xf32, #tpu.memory_space<vmem>>, vector<8x16xf32>
    tpu.vector_store %arg3[%c0_41, %c0_42], %114 {strides = array<i32>} : memref<8x16xf32, #tpu.memory_space<vmem>>, vector<8x16xf32>,
    return
  }
}

</mosaic_0001>

<llo_original>
// kernel: lame_forward.1
$region0: #{lame_forward.1}
  #allocation0 [shape = 'u32[]', space=smem, size = 0x4, offset = 0x4, fixed_abs, tag = 'smem constant byte address 0x4 - core index']
  #allocation1 [shape = 'u32[144,128]{1,0:T(1,128)}', space=vmem, size = 0x12000, scoped, tag = 'internal scratch']
  %s0 = inlined_call_operand.vmem [shape: f32[8,192], index: 0, kind: input, shape index: {}]
  %s1 = inlined_call_operand.vmem [shape: f32[192,32], index: 1, kind: input, shape index: {}]
  %s2 = inlined_call_operand.vmem [shape: f32[192,16], index: 2, kind: input, shape index: {}]
  %s3 = inlined_call_operand.hbm [shape: f32[8,16], index: 3, kind: output, shape index: {}]
  %s4 = sld [smem:[#allocation0]]
  $region29: #{lame_forward.1} parent=0
    _
  %s6 = ssub.s32 1, %s4
  %s7 = scalar_select 0, %s6, %s4
  $region1: #{lame_forward.1} parent=0
    #allocation2 [shape = 'u8[4096]{0}', space=vmem, size = 0x1000, scoped, tag = 'output window, operand 0, single buffered']
    #allocation3 [shape = 's32[1]{0}', space=sflag, size = 0x4, scoped, tag = 'scoped memory for lame_forward.1']
    %8 = vsyncpa [#allocation3], 0
    // Predicated region
    $region2: #{lame_forward.1} parent=1 // pred_check
      _
    $region3: #{lame_forward.1} parent=1 // pred_check_branch
      %10 = sbr.rel (0) target = $region5
    $region4: #{lame_forward.1} parent=1 // pred_region
      _
    $region5: #{lame_forward.1} parent=1 // pred_fallthru
      _
    // Predicated region
    $region6: #{lame_forward.1} parent=1 // pred_check
      _
    $region7: #{lame_forward.1} parent=1 // pred_check_branch
      %12 = sbr.rel (0) target = $region9
    $region8: #{lame_forward.1} parent=1 // pred_region
      _
    $region9: #{lame_forward.1} parent=1 // pred_fallthru
      _
    // Predicated region
    $region10: #{lame_forward.1} parent=1 // pred_check
      _
    $region11: #{lame_forward.1} parent=1 // pred_check_branch
      %14 = sbr.rel (0) target = $region13
    $region12: #{lame_forward.1} parent=1 // pred_region
      _
    $region13: #{lame_forward.1} parent=1 // pred_fallthru
      _
    %v15 = vld [vmem:[%s0] sm:$0xff]
    %v16 = vld [vmem:[%s0 + $0x8] sm:$0xff]
    %v17 = vld [vmem:[%s1] sm:$0xff]
    %v18 = vld [vmem:[%s1 + $0x8] sm:$0xff]
    %v19 = vld [vmem:[%s1 + $0x10] sm:$0xff]
    %v20 = vld [vmem:[%s1 + $0x18] sm:$0xff]
    %v21 = vld [vmem:[%s1 + $0x20] sm:$0xff]
    %v22 = vld [vmem:[%s1 + $0x28] sm:$0xff]
    %v23 = vld [vmem:[%s1 + $0x30] sm:$0xff]
    %v24 = vld [vmem:[%s1 + $0x38] sm:$0xff]
    %v25 = vld [vmem:[%s1 + $0x40] sm:$0xff]
    %v26 = vld [vmem:[%s1 + $0x48] sm:$0xff]
    %v27 = vld [vmem:[%s1 + $0x50] sm:$0xff]
    %v28 = vld [vmem:[%s1 + $0x58] sm:$0xff]
    %v29 = vld [vmem:[%s1 + $0x60] sm:$0xff]
    %v30 = vld [vmem:[%s1 + $0x68] sm:$0xff]
    %v31 = vld [vmem:[%s1 + $0x70] sm:$0xff]
    %v32 = vld [vmem:[%s1 + $0x78] sm:$0xff]
    %v33 = vld [vmem:[%s1 + $0x80] sm:$0xff]
    %v34 = vld [vmem:[%s1 + $0x88] sm:$0xff]
    %v35 = vld [vmem:[%s1 + $0x90] sm:$0xff]
    %v36 = vld [vmem:[%s1 + $0x98] sm:$0xff]
    %v37 = vld [vmem:[%s1 + $0xa0] sm:$0xff]
    %v38 = vld [vmem:[%s1 + $0xa8] sm:$0xff]
    %v39 = vld [vmem:[%s1 + $0xb0] sm:$0xff]
    %v40 = vld [vmem:[%s1 + $0xb8] sm:$0xff]
    %vm41 = vcmask 523264
    %v43 = vsel %vm41, %v16, 0
    %45 = vmatprep.subr.mxu0 0.0
    %46 = vmatpush1.msra.mxu0 %v32
    %47 = vmatprep.subr.mxu0 0.0
    %48 = vmatpush1.msra.mxu0 %v31
    %49 = vmatprep.subr.mxu0 0.0
    %50 = vmatpush1.msra.mxu0 %v30
    %51 = vmatprep.subr.mxu0 0.0
    %52 = vmatpush1.msra.mxu0 %v29
    %53 = vmatprep.subr.mxu0 0.0
    %54 = vmatpush1.msra.mxu0 %v28
    %55 = vmatprep.subr.mxu0 0.0
    %56 = vmatpush1.msra.mxu0 %v27
    %57 = vmatprep.subr.mxu0 0.0
    %58 = vmatpush1.msra.mxu0 %v26
    %59 = vmatprep.subr.mxu0 0.0
    %60 = vmatpush1.msra.mxu0 %v25
    %61 = vmatprep.subr.mxu0 0.0
    %62 = vmatpush1.msra.mxu0 %v24
    %63 = vmatprep.subr.mxu0 0.0
    %64 = vmatpush1.msra.mxu0 %v23
    %65 = vmatprep.subr.mxu0 0.0
    %66 = vmatpush1.msra.mxu0 %v22
    %67 = vmatprep.subr.mxu0 0.0
    %68 = vmatpush1.msra.mxu0 %v21
    %69 = vmatprep.subr.mxu0 0.0
    %70 = vmatpush1.msra.mxu0 %v20
    %71 = vmatprep.subr.mxu0 0.0
    %72 = vmatpush1.msra.mxu0 %v19
    %73 = vmatprep.subr.mxu0 0.0
    %74 = vmatpush1.msra.mxu0 %v18
    %75 = vmatprep.subr.mxu0 0.0
    %76 = vmatpush1.msra.mxu0 %v17
    %77 = vmatprep.subr.mxu0 0.0
    %78 = vmatpush2.msra.mxu0 0.0
    %79 = vmatprep.subr.mxu0 0.0
    %80 = vmatpush2.msra.mxu0 0.0
    %81 = vmatprep.subr.mxu0 0.0
    %82 = vmatpush2.msra.mxu0 0.0
    %83 = vmatprep.subr.mxu0 0.0
    %84 = vmatpush2.msra.mxu0 0.0
    %85 = vmatprep.subr.mxu0 0.0
    %86 = vmatpush2.msra.mxu0 0.0
    %87 = vmatprep.subr.mxu0 0.0
    %88 = vmatpush2.msra.mxu0 0.0
    %89 = vmatprep.subr.mxu0 0.0
    %90 = vmatpush2.msra.mxu0 0.0
    %91 = vmatprep.subr.mxu0 0.0
    %92 = vmatpush2.msra.mxu0 0.0
    %93 = vmatprep.subr.mxu0 0.0
    %94 = vmatpush2.msra.mxu0 %v40
    %95 = vmatprep.subr.mxu0 0.0
    %96 = vmatpush2.msra.mxu0 %v39
    %97 = vmatprep.subr.mxu0 0.0
    %98 = vmatpush2.msra.mxu0 %v38
    %99 = vmatprep.subr.mxu0 0.0
    %100 = vmatpush2.msra.mxu0 %v37
    %101 = vmatprep.subr.mxu0 0.0
    %102 = vmatpush2.msra.mxu0 %v36
    %103 = vmatprep.subr.mxu0 0.0
    %104 = vmatpush2.msra.mxu0 %v35
    %105 = vmatprep.subr.mxu0 0.0
    %106 = vmatpush2.msra.mxu0 %v34
    %107 = vmatprep.subr.mxu0 0.0
    %108 = vmatpush2.msra.mxu0 %v33
    %109 = vmatprep.mubr.f32.mxu0 %v43
    %110 = vmatmul.mubr.f32.gmra.mxu0 %v15
    %v111 = vpop.f32.mrf.mxu0
    %v112 = vadd.f32 0.0, %v111
    %v113 = vpop.f32.mrf.mxu0
    %114 = vdwg.mxu0
    %v115 = vld [vmem:[%s2] sm:$0xff]
    %v116 = vld [vmem:[%s2 + $0x8] sm:$0xff]
    %v117 = vld [vmem:[%s2 + $0x10] sm:$0xff]
    %v118 = vld [vmem:[%s2 + $0x18] sm:$0xff]
    %v119 = vld [vmem:[%s2 + $0x20] sm:$0xff]
    %v120 = vld [vmem:[%s2 + $0x28] sm:$0xff]
    %v121 = vld [vmem:[%s2 + $0x30] sm:$0xff]
    %v122 = vld [vmem:[%s2 + $0x38] sm:$0xff]
    %v123 = vld [vmem:[%s2 + $0x40] sm:$0xff]
    %v124 = vld [vmem:[%s2 + $0x48] sm:$0xff]
    %v125 = vld [vmem:[%s2 + $0x50] sm:$0xff]
    %v126 = vld [vmem:[%s2 + $0x58] sm:$0xff]
    %v127 = vld [vmem:[%s2 + $0x60] sm:$0xff]
    %v128 = vld [vmem:[%s2 + $0x68] sm:$0xff]
    %v129 = vld [vmem:[%s2 + $0x70] sm:$0xff]
    %v130 = vld [vmem:[%s2 + $0x78] sm:$0xff]
    %v131 = vld [vmem:[%s2 + $0x80] sm:$0xff]
    %v132 = vld [vmem:[%s2 + $0x88] sm:$0xff]
    %v133 = vld [vmem:[%s2 + $0x90] sm:$0xff]
    %v134 = vld [vmem:[%s2 + $0x98] sm:$0xff]
    %v135 = vld [vmem:[%s2 + $0xa0] sm:$0xff]
    %v136 = vld [vmem:[%s2 + $0xa8] sm:$0xff]
    %v137 = vld [vmem:[%s2 + $0xb0] sm:$0xff]
    %v138 = vld [vmem:[%s2 + $0xb8] sm:$0xff]
    %139 = vmatprep.subr.mxu0 0.0
    %140 = vmatpush1.msra.mxu0 %v130
    %141 = vmatprep.subr.mxu0 0.0
    %142 = vmatpush1.msra.mxu0 %v129
    %143 = vmatprep.subr.mxu0 0.0
    %144 = vmatpush1.msra.mxu0 %v128
    %145 = vmatprep.subr.mxu0 0.0
    %146 = vmatpush1.msra.mxu0 %v127
    %147 = vmatprep.subr.mxu0 0.0
    %148 = vmatpush1.msra.mxu0 %v126
    %149 = vmatprep.subr.mxu0 0.0
    %150 = vmatpush1.msra.mxu0 %v125
    %151 = vmatprep.subr.mxu0 0.0
    %152 = vmatpush1.msra.mxu0 %v124
    %153 = vmatprep.subr.mxu0 0.0
    %154 = vmatpush1.msra.mxu0 %v123
    %155 = vmatprep.subr.mxu0 0.0
    %156 = vmatpush1.msra.mxu0 %v122
    %157 = vmatprep.subr.mxu0 0.0
    %158 = vmatpush1.msra.mxu0 %v121
    %159 = vmatprep.subr.mxu0 0.0
    %160 = vmatpush1.msra.mxu0 %v120
    %161 = vmatprep.subr.mxu0 0.0
    %162 = vmatpush1.msra.mxu0 %v119
    %163 = vmatprep.subr.mxu0 0.0
    %164 = vmatpush1.msra.mxu0 %v118
    %165 = vmatprep.subr.mxu0 0.0
    %166 = vmatpush1.msra.mxu0 %v117
    %167 = vmatprep.subr.mxu0 0.0
    %168 = vmatpush1.msra.mxu0 %v116
    %169 = vmatprep.subr.mxu0 0.0
    %170 = vmatpush1.msra.mxu0 %v115
    %171 = vmatprep.subr.mxu0 0.0
    %172 = vmatpush2.msra.mxu0 0.0
    %173 = vmatprep.subr.mxu0 0.0
    %174 = vmatpush2.msra.mxu0 0.0
    %175 = vmatprep.subr.mxu0 0.0
    %176 = vmatpush2.msra.mxu0 0.0
    %177 = vmatprep.subr.mxu0 0.0
    %178 = vmatpush2.msra.mxu0 0.0
    %179 = vmatprep.subr.mxu0 0.0
    %180 = vmatpush2.msra.mxu0 0.0
    %181 = vmatprep.subr.mxu0 0.0
    %182 = vmatpush2.msra.mxu0 0.0
    %183 = vmatprep.subr.mxu0 0.0
    %184 = vmatpush2.msra.mxu0 0.0
    %185 = vmatprep.subr.mxu0 0.0
    %186 = vmatpush2.msra.mxu0 0.0
    %187 = vmatprep.subr.mxu0 0.0
    %188 = vmatpush2.msra.mxu0 %v138
    %189 = vmatprep.subr.mxu0 0.0
    %190 = vmatpush2.msra.mxu0 %v137
    %191 = vmatprep.subr.mxu0 0.0
    %192 = vmatpush2.msra.mxu0 %v136
    %193 = vmatprep.subr.mxu0 0.0
    %194 = vmatpush2.msra.mxu0 %v135
    %195 = vmatprep.subr.mxu0 0.0
    %196 = vmatpush2.msra.mxu0 %v134
    %197 = vmatprep.subr.mxu0 0.0
    %198 = vmatpush2.msra.mxu0 %v133
    %199 = vmatprep.subr.mxu0 0.0
    %200 = vmatpush2.msra.mxu0 %v132
    %201 = vmatprep.subr.mxu0 0.0
    %202 = vmatpush2.msra.mxu0 %v131
    %203 = vmatprep.mubr.f32.mxu0 %v43
    %204 = vmatmul.mubr.f32.gmra.mxu0 %v15
    %v205 = vpop.f32.mrf.mxu0
    %v206 = vadd.f32 0.0, %v205
    %v207 = vpop.f32.mrf.mxu0
    %208 = vdwg.mxu0
    %vm209 = vcmask 130048
    %v210 = vsel %vm209, %v206, -inf
    %211 = vmax.xlane.f32.xlu0 %v210
    %v212 = vpop.xlane.xlu0 %211
    %v213 = vsub.f32 %v206, %v212
    %v214 = vmul.f32 %v213, 1.442695
    %v215 = vpow.pop %v214
    %v216 = vsel %vm209, %v215, 0.0
    %217 = vadd.xlane.f32.xlu0 %v216
    %v218 = vpop.xlane.xlu0 %217
    %v219 = vrcp.pop %v218
    %v220 = vmul.f32 %v215, %v219
    %v221 = vadd.f32 %v220, 1e-10
    %v222 = vlog2.pop %v221
    %v223 = vmul.f32 %v222, 0.6931472
    %v224 = vsub.f32 0.0, %v223
    %v225 = vmul.f32 %v112, %v112
    %vm226 = vcmask 261120
    %v227 = vsel %vm226, %v225, 0.0
    %228 = vadd.xlane.f32.xlu0 %v227
    %v229 = vpop.xlane.xlu0 %228
    %v230 = vrsqrt.pop %v229
    %v231 = vmul.f32 %v229, %v230
    %vm232 = vcmp.eq.f32.partialorder %v229, inf
    %v233 = vsel %vm232, %v229, %v231
    %vm234 = vcmp.eq.f32.partialorder %v229, 0.0
    %v235 = vand.u32 %v229, 2147483648
    %v236 = vsel %vm234, %v235, %v233
    %v237 = vmax.f32 %v236, 1e-12
    %v238 = vrcp.pop %v237
    %v239 = vmul.f32 %v112, %v238
    %v241 = vsel %vm226, %v239, 0
    %243 = vmatprep.subr.mxu0 0.0
    %244 = vmatpush1.xpose.msra.mxu0 0.0
    %245 = vmatprep.subr.mxu0 0.0
    %246 = vmatpush1.xpose.msra.mxu0 0.0
    %247 = vmatprep.subr.mxu0 0.0
    %248 = vmatpush1.xpose.msra.mxu0 0.0
    %249 = vmatprep.subr.mxu0 0.0
    %250 = vmatpush1.xpose.msra.mxu0 0.0
    %251 = vmatprep.subr.mxu0 0.0
    %252 = vmatpush1.xpose.msra.mxu0 0.0
    %253 = vmatprep.subr.mxu0 0.0
    %254 = vmatpush1.xpose.msra.mxu0 0.0
    %255 = vmatprep.subr.mxu0 0.0
    %256 = vmatpush1.xpose.msra.mxu0 0.0
    %257 = vmatprep.subr.mxu0 0.0
    %258 = vmatpush1.xpose.msra.mxu0 0.0
    %259 = vmatprep.subr.mxu0 0.0
    %260 = vmatpush1.xpose.msra.mxu0 0.0
    %261 = vmatprep.subr.mxu0 0.0
    %262 = vmatpush1.xpose.msra.mxu0 0.0
    %263 = vmatprep.subr.mxu0 0.0
    %264 = vmatpush1.xpose.msra.mxu0 0.0
    %265 = vmatprep.subr.mxu0 0.0
    %266 = vmatpush1.xpose.msra.mxu0 0.0
    %267 = vmatprep.subr.mxu0 0.0
    %268 = vmatpush1.xpose.msra.mxu0 0.0
    %269 = vmatprep.subr.mxu0 0.0
    %270 = vmatpush1.xpose.msra.mxu0 0.0
    %271 = vmatprep.subr.mxu0 0.0
    %272 = vmatpush1.xpose.msra.mxu0 0.0
    %273 = vmatprep.subr.mxu0 0.0
    %274 = vmatpush1.xpose.msra.mxu0 %v241
    %275 = vmatprep.subr.mxu0 0.0
    %276 = vmatpush2.xpose.msra.mxu0 0.0
    %277 = vmatprep.subr.mxu0 0.0
    %278 = vmatpush2.xpose.msra.mxu0 0.0
    %279 = vmatprep.subr.mxu0 0.0
    %280 = vmatpush2.xpose.msra.mxu0 0.0
    %281 = vmatprep.subr.mxu0 0.0
    %282 = vmatpush2.xpose.msra.mxu0 0.0
    %283 = vmatprep.subr.mxu0 0.0
    %284 = vmatpush2.xpose.msra.mxu0 0.0
    %285 = vmatprep.subr.mxu0 0.0
    %286 = vmatpush2.xpose.msra.mxu0 0.0
    %287 = vmatprep.subr.mxu0 0.0
    %288 = vmatpush2.xpose.msra.mxu0 0.0
    %289 = vmatprep.subr.mxu0 0.0
    %290 = vmatpush2.xpose.msra.mxu0 0.0
    %291 = vmatprep.subr.mxu0 0.0
    %292 = vmatpush2.xpose.msra.mxu0 0.0
    %293 = vmatprep.subr.mxu0 0.0
    %294 = vmatpush2.xpose.msra.mxu0 0.0
    %295 = vmatprep.subr.mxu0 0.0
    %296 = vmatpush2.xpose.msra.mxu0 0.0
    %297 = vmatprep.subr.mxu0 0.0
    %298 = vmatpush2.xpose.msra.mxu0 0.0
    %299 = vmatprep.subr.mxu0 0.0
    %300 = vmatpush2.xpose.msra.mxu0 0.0
    %301 = vmatprep.subr.mxu0 0.0
    %302 = vmatpush2.xpose.msra.mxu0 0.0
    %303 = vmatprep.subr.mxu0 0.0
    %304 = vmatpush2.xpose.msra.mxu0 0.0
    %305 = vmatprep.subr.mxu0 0.0
    %306 = vmatpush2.xpose.msra.mxu0 0.0
    %307 = vmatprep.mubr.f32.mxu0 0.0
    %308 = vmatmul.mubr.f32.gmra.mxu0 %v241
    %v309 = vpop.f32.mrf.mxu0
    %v310 = vadd.f32 0.0, %v309
    %v311 = vpop.f32.mrf.mxu0
    %312 = vdwg.mxu0
    %v313 = vmul.f32 %v310, 2.0
    %v314 = vsub.f32 2.0, %v313
    %v315 = vmax.f32 %v314, 0.0
    %v316 = vlaneseq
    %v317 = vand.u32 %v316, 127
    %vm318 = vcmask 64512
    %v319 = vsel %vm318, %v315, inf
    %320 = vmin.xlane.f32.xlu0 %v319
    %v321 = vpop.xlane.xlu0 %320
    %vm322 = vcmp.eq.f32.partialorder %v315, %v321
    %v323 = vsel %vm322, %v317, 8
    %v324 = vsel %vm318, %v323, 2147483647
    %v325 = vand.u32 %v324, 65535
    %v326 = vshra.s32 %v324, 16
    %v327 = vcvt.s32.f32 %v325
    %v328 = vcvt.s32.f32 %v326
    %329 = vmin.xlane.f32.xlu0 %v328
    %v330 = vpop.xlane.xlu0 %329
    %vm331 = vcmp.eq.f32.partialorder %v328, %v330
    %v332 = vsel %vm331, %v327, inf
    %333 = vmin.xlane.f32.xlu0 %v332
    %v334 = vpop.xlane.xlu0 %333
    %v335 = vcvt.f32.s32 %v334
    %v336 = vcvt.f32.s32 %v330
    %v337 = vshll.u32 %v336, 16
    %v338 = vadd.s32 %v337, %v335
    %vm339 = vcmp.eq.s32.totalorder %v317, %v338
    %v340 = vsel %vm339, 1e+30, %v315
    %v341 = vsel %vm318, %v340, inf
    %342 = vmin.xlane.f32.xlu0 %v341
    %v343 = vpop.xlane.xlu0 %342
    %vm344 = vcmp.eq.f32.partialorder %v340, %v343
    %v345 = vsel %vm344, %v317, 8
    %v346 = vsel %vm318, %v345, 2147483647
    %v347 = vand.u32 %v346, 65535
    %v348 = vshra.s32 %v346, 16
    %v349 = vcvt.s32.f32 %v347
    %v350 = vcvt.s32.f32 %v348
    %351 = vmin.xlane.f32.xlu0 %v350
    %v352 = vpop.xlane.xlu0 %351
    %vm353 = vcmp.eq.f32.partialorder %v350, %v352
    %v354 = vsel %vm353, %v349, inf
    %355 = vmin.xlane.f32.xlu0 %v354
    %v356 = vpop.xlane.xlu0 %355
    %v357 = vcvt.f32.s32 %v356
    %v358 = vcvt.f32.s32 %v352
    %v359 = vshll.u32 %v358, 16
    %v360 = vadd.s32 %v359, %v357
    %vm361 = vcmp.eq.s32.totalorder %v317, %v360
    %v362 = vsel %vm361, 1e+30, %v340
    %v363 = vsel %vm318, %v362, inf
    %364 = vmin.xlane.f32.xlu0 %v363
    %v365 = vpop.xlane.xlu0 %364
    %vm366 = vcmp.eq.f32.partialorder %v362, %v365
    %v367 = vsel %vm366, %v317, 8
    %v368 = vsel %vm318, %v367, 2147483647
    %v369 = vand.u32 %v368, 65535
    %v370 = vshra.s32 %v368, 16
    %v371 = vcvt.s32.f32 %v369
    %v372 = vcvt.s32.f32 %v370
    %373 = vmin.xlane.f32.xlu0 %v372
    %v374 = vpop.xlane.xlu0 %373
    %vm375 = vcmp.eq.f32.partialorder %v372, %v374
    %v376 = vsel %vm375, %v371, inf
    %377 = vmin.xlane.f32.xlu0 %v376
    %v378 = vpop.xlane.xlu0 %377
    %v379 = vcvt.f32.s32 %v378
    %v380 = vcvt.f32.s32 %v374
    %v381 = vshll.u32 %v380, 16
    %v382 = vadd.s32 %v381, %v379
    %vm383 = vcmp.eq.s32.totalorder %v317, %v382
    %v384 = vsel %vm383, 1e+30, %v362
    %v385 = vsel %vm318, %v384, inf
    %386 = vmin.xlane.f32.xlu0 %v385
    %v387 = vpop.xlane.xlu0 %386
    %vm388 = vcmp.eq.f32.partialorder %v384, %v387
    %v389 = vsel %vm388, %v317, 8
    %v390 = vsel %vm318, %v389, 2147483647
    %v391 = vand.u32 %v390, 65535
    %v392 = vshra.s32 %v390, 16
    %v393 = vcvt.s32.f32 %v391
    %v394 = vcvt.s32.f32 %v392
    %395 = vmin.xlane.f32.xlu0 %v394
    %v396 = vpop.xlane.xlu0 %395
    %vm397 = vcmp.eq.f32.partialorder %v394, %v396
    %v398 = vsel %vm397, %v393, inf
    %399 = vmin.xlane.f32.xlu0 %v398
    %v400 = vpop.xlane.xlu0 %399
    %v401 = vcvt.f32.s32 %v400
    %v402 = vcvt.f32.s32 %v396
    %v403 = vshll.u32 %v402, 16
    %v404 = vadd.s32 %v403, %v401
    %vm405 = vcmp.eq.s32.totalorder %v317, %v404
    %v406 = vsel %vm405, 1e+30, %v384
    %v407 = vsel %vm318, %v406, inf
    %408 = vmin.xlane.f32.xlu0 %v407
    %v409 = vpop.xlane.xlu0 %408
    %v410 = vrsqrt.pop %v409
    %v411 = vmul.f32 %v409, %v410
    %vm412 = vcmp.eq.f32.partialorder %v409, inf
    %v413 = vsel %vm412, %v409, %v411
    %vm414 = vcmp.eq.f32.partialorder %v409, 0.0
    %v415 = vand.u32 %v409, 2147483648
    %v416 = vsel %vm414, %v415, %v413
    %vm417 = vcmask 7168
    %v418 = vsel %vm417, %v416, 0.0
    %419 = vadd.xlane.f32.xlu0 %v418
    %v420 = vpop.xlane.xlu0 %419
    %v421 = vrot.slane %v420, 4
    %v422 = vadd.f32 %v420, %v421
    %v423 = vrot.slane %v422, 2
    %v424 = vadd.f32 %v422, %v423
    %v425 = vrot.slane %v424, 1
    %v426 = vadd.f32 %v424, %v425
    %s427 = vtos %v426
    %v428 = vrcp.pop 8.0
    %s429 = vtos %v428
    %s430 = smul.f32 %s427, %s429
    %s431 = smul.f32 %s430, %s430
    %v432 = vstv %s431
    %v433 = vrcp.pop %v432
    %s434 = vtos %v433
    %s435 = smul.f32 -0.5, %s434
    %v436 = vstv %s435
    %v437 = vmul.f32 %v315, %v436
    %v438 = vmul.f32 %v437, 1.442695
    %v439 = vpow.pop %v438
    %v440 = vsub.f32 0.0, %v224
    %v441 = vsel %vm209, %v440, -inf
    %442 = vmax.xlane.f32.xlu0 %v441
    %v443 = vpop.xlane.xlu0 %442
    %v444 = vsub.f32 %v440, %v443
    %v445 = vmul.f32 %v444, 1.442695
    %v446 = vpow.pop %v445
    %v447 = vsel %vm209, %v446, 0.0
    %448 = vadd.xlane.f32.xlu0 %v447
    %v449 = vpop.xlane.xlu0 %448
    %v450 = vrcp.pop %v449
    %v451 = vmul.f32 %v446, %v450
    // While loop
    $region14: #{lame_forward.1} parent=1 // loop_pre_header
      _
    $region15: #{lame_forward.1} parent=1 // loop_header
      %s453 = sphi 0, %s814
      %v454 = vphi %v451, %v790
      %s455 = sphi inf, %s804
      %p456 = pphi 1, %p817
      %p457 = pneg %p456
    $region16: #{lame_forward.1} parent=1 // loop_header_branch
      %459 = sbr.rel (%p457) target = $region20
    $region17: #{lame_forward.1} parent=1 // loop_body
      %v461 = vsel %vm318, %v439, 0
      %463 = vmatprep.subr.mxu0 0.0
      %464 = vmatpush1.msra.mxu0 0.0
      %465 = vmatprep.subr.mxu0 0.0
      %466 = vmatpush1.msra.mxu0 0.0
      %467 = vmatprep.subr.mxu0 0.0
      %468 = vmatpush1.msra.mxu0 0.0
      %469 = vmatprep.subr.mxu0 0.0
      %470 = vmatpush1.msra.mxu0 0.0
      %471 = vmatprep.subr.mxu0 0.0
      %472 = vmatpush1.msra.mxu0 0.0
      %473 = vmatprep.subr.mxu0 0.0
      %474 = vmatpush1.msra.mxu0 0.0
      %475 = vmatprep.subr.mxu0 0.0
      %476 = vmatpush1.msra.mxu0 0.0
      %477 = vmatprep.subr.mxu0 0.0
      %478 = vmatpush1.msra.mxu0 0.0
      %479 = vmatprep.subr.mxu0 0.0
      %480 = vmatpush1.msra.mxu0 0.0
      %481 = vmatprep.subr.mxu0 0.0
      %482 = vmatpush1.msra.mxu0 0.0
      %483 = vmatprep.subr.mxu0 0.0
      %484 = vmatpush1.msra.mxu0 0.0
      %485 = vmatprep.subr.mxu0 0.0
      %486 = vmatpush1.msra.mxu0 0.0
      %487 = vmatprep.subr.mxu0 0.0
      %488 = vmatpush1.msra.mxu0 0.0
      %489 = vmatprep.subr.mxu0 0.0
      %490 = vmatpush1.msra.mxu0 0.0
      %491 = vmatprep.subr.mxu0 0.0
      %492 = vmatpush1.msra.mxu0 0.0
      %493 = vmatprep.subr.mxu0 0.0
      %494 = vmatpush1.msra.mxu0 %v454
      %495 = vmatprep.subr.mxu0 0.0
      %496 = vmatpush2.msra.mxu0 0.0
      %497 = vmatprep.subr.mxu0 0.0
      %498 = vmatpush2.msra.mxu0 0.0
      %499 = vmatprep.subr.mxu0 0.0
      %500 = vmatpush2.msra.mxu0 0.0
      %501 = vmatprep.subr.mxu0 0.0
      %502 = vmatpush2.msra.mxu0 0.0
      %503 = vmatprep.subr.mxu0 0.0
      %504 = vmatpush2.msra.mxu0 0.0
      %505 = vmatprep.subr.mxu0 0.0
      %506 = vmatpush2.msra.mxu0 0.0
      %507 = vmatprep.subr.mxu0 0.0
      %508 = vmatpush2.msra.mxu0 0.0
      %509 = vmatprep.subr.mxu0 0.0
      %510 = vmatpush2.msra.mxu0 0.0
      %511 = vmatprep.subr.mxu0 0.0
      %512 = vmatpush2.msra.mxu0 0.0
      %513 = vmatprep.subr.mxu0 0.0
      %514 = vmatpush2.msra.mxu0 0.0
      %515 = vmatprep.subr.mxu0 0.0
      %516 = vmatpush2.msra.mxu0 0.0
      %517 = vmatprep.subr.mxu0 0.0
      %518 = vmatpush2.msra.mxu0 0.0
      %519 = vmatprep.subr.mxu0 0.0
      %520 = vmatpush2.msra.mxu0 0.0
      %521 = vmatprep.subr.mxu0 0.0
      %522 = vmatpush2.msra.mxu0 0.0
      %523 = vmatprep.subr.mxu0 0.0
      %524 = vmatpush2.msra.mxu0 0.0
      %525 = vmatprep.subr.mxu0 0.0
      %526 = vmatpush2.msra.mxu0 0.0
      %527 = vmatprep.mubr.f32.mxu0 0.0
      %528 = vmatmul.mubr.f32.gmra.mxu0 %v461
      %v529 = vpop.f32.mrf.mxu0
      %v530 = vadd.f32 0.0, %v529
      %v531 = vpop.f32.mrf.mxu0
      %532 = vdwg.mxu0
      %v533 = vsub.f32 %v530, %v224
      %v534 = vsel %vm209, %v533, -inf
      %535 = vmax.xlane.f32.xlu0 %v534
      %v536 = vpop.xlane.xlu0 %535
      %v537 = vsub.f32 %v533, %v536
      %v538 = vmul.f32 %v537, 1.442695
      %v539 = vpow.pop %v538
      %v540 = vsel %vm209, %v539, 0.0
      %541 = vadd.xlane.f32.xlu0 %v540
      %v542 = vpop.xlane.xlu0 %541
      %v543 = vrcp.pop %v542
      %v544 = vmul.f32 %v539, %v543
      %545 = vmatprep.subr.mxu0 0.0
      %546 = vmatpush1.msra.mxu0 0.0
      %547 = vmatprep.subr.mxu0 0.0
      %548 = vmatpush1.msra.mxu0 0.0
      %549 = vmatprep.subr.mxu0 0.0
      %550 = vmatpush1.msra.mxu0 0.0
      %551 = vmatprep.subr.mxu0 0.0
      %552 = vmatpush1.msra.mxu0 0.0
      %553 = vmatprep.subr.mxu0 0.0
      %554 = vmatpush1.msra.mxu0 0.0
      %555 = vmatprep.subr.mxu0 0.0
      %556 = vmatpush1.msra.mxu0 0.0
      %557 = vmatprep.subr.mxu0 0.0
      %558 = vmatpush1.msra.mxu0 0.0
      %559 = vmatprep.subr.mxu0 0.0
      %560 = vmatpush1.msra.mxu0 0.0
      %561 = vmatprep.subr.mxu0 0.0
      %562 = vmatpush1.msra.mxu0 0.0
      %563 = vmatprep.subr.mxu0 0.0
      %564 = vmatpush1.msra.mxu0 0.0
      %565 = vmatprep.subr.mxu0 0.0
      %566 = vmatpush1.msra.mxu0 0.0
      %567 = vmatprep.subr.mxu0 0.0
      %568 = vmatpush1.msra.mxu0 0.0
      %569 = vmatprep.subr.mxu0 0.0
      %570 = vmatpush1.msra.mxu0 0.0
      %571 = vmatprep.subr.mxu0 0.0
      %572 = vmatpush1.msra.mxu0 0.0
      %573 = vmatprep.subr.mxu0 0.0
      %574 = vmatpush1.msra.mxu0 0.0
      %575 = vmatprep.subr.mxu0 0.0
      %576 = vmatpush1.msra.mxu0 %v544
      %577 = vmatprep.subr.mxu0 0.0
      %578 = vmatpush2.msra.mxu0 0.0
      %579 = vmatprep.subr.mxu0 0.0
      %580 = vmatpush2.msra.mxu0 0.0
      %581 = vmatprep.subr.mxu0 0.0
      %582 = vmatpush2.msra.mxu0 0.0
      %583 = vmatprep.subr.mxu0 0.0
      %584 = vmatpush2.msra.mxu0 0.0
      %585 = vmatprep.subr.mxu0 0.0
      %586 = vmatpush2.msra.mxu0 0.0
      %587 = vmatprep.subr.mxu0 0.0
      %588 = vmatpush2.msra.mxu0 0.0
      %589 = vmatprep.subr.mxu0 0.0
      %590 = vmatpush2.msra.mxu0 0.0
      %591 = vmatprep.subr.mxu0 0.0
      %592 = vmatpush2.msra.mxu0 0.0
      %593 = vmatprep.subr.mxu0 0.0
      %594 = vmatpush2.msra.mxu0 0.0
      %595 = vmatprep.subr.mxu0 0.0
      %596 = vmatpush2.msra.mxu0 0.0
      %597 = vmatprep.subr.mxu0 0.0
      %598 = vmatpush2.msra.mxu0 0.0
      %599 = vmatprep.subr.mxu0 0.0
      %600 = vmatpush2.msra.mxu0 0.0
      %601 = vmatprep.subr.mxu0 0.0
      %602 = vmatpush2.msra.mxu0 0.0
      %603 = vmatprep.subr.mxu0 0.0
      %604 = vmatpush2.msra.mxu0 0.0
      %605 = vmatprep.subr.mxu0 0.0
      %606 = vmatpush2.msra.mxu0 0.0
      %607 = vmatprep.subr.mxu0 0.0
      %608 = vmatpush2.msra.mxu0 0.0
      %609 = vmatprep.mubr.f32.mxu0 0.0
      %610 = vmatmul.mubr.f32.gmra.mxu0 %v461
      %v611 = vpop.f32.mrf.mxu0
      %v612 = vadd.f32 0.0, %v611
      %v613 = vpop.f32.mrf.mxu0
      %614 = vdwg.mxu0
      %v615 = vsub.f32 %v612, %v224
      %v616 = vsel %vm209, %v615, -inf
      %617 = vmax.xlane.f32.xlu0 %v616
      %v618 = vpop.xlane.xlu0 %617
      %v619 = vsub.f32 %v615, %v618
      %v620 = vmul.f32 %v619, 1.442695
      %v621 = vpow.pop %v620
      %v622 = vsel %vm209, %v621, 0.0
      %623 = vadd.xlane.f32.xlu0 %v622
      %v624 = vpop.xlane.xlu0 %623
      %v625 = vrcp.pop %v624
      %v626 = vmul.f32 %v621, %v625
      %627 = vmatprep.subr.mxu0 0.0
      %628 = vmatpush1.msra.mxu0 0.0
      %629 = vmatprep.subr.mxu0 0.0
      %630 = vmatpush1.msra.mxu0 0.0
      %631 = vmatprep.subr.mxu0 0.0
      %632 = vmatpush1.msra.mxu0 0.0
      %633 = vmatprep.subr.mxu0 0.0
      %634 = vmatpush1.msra.mxu0 0.0
      %635 = vmatprep.subr.mxu0 0.0
      %636 = vmatpush1.msra.mxu0 0.0
      %637 = vmatprep.subr.mxu0 0.0
      %638 = vmatpush1.msra.mxu0 0.0
      %639 = vmatprep.subr.mxu0 0.0
      %640 = vmatpush1.msra.mxu0 0.0
      %641 = vmatprep.subr.mxu0 0.0
      %642 = vmatpush1.msra.mxu0 0.0
      %643 = vmatprep.subr.mxu0 0.0
      %644 = vmatpush1.msra.mxu0 0.0
      %645 = vmatprep.subr.mxu0 0.0
      %646 = vmatpush1.msra.mxu0 0.0
      %647 = vmatprep.subr.mxu0 0.0
      %648 = vmatpush1.msra.mxu0 0.0
      %649 = vmatprep.subr.mxu0 0.0
      %650 = vmatpush1.msra.mxu0 0.0
      %651 = vmatprep.subr.mxu0 0.0
      %652 = vmatpush1.msra.mxu0 0.0
      %653 = vmatprep.subr.mxu0 0.0
      %654 = vmatpush1.msra.mxu0 0.0
      %655 = vmatprep.subr.mxu0 0.0
      %656 = vmatpush1.msra.mxu0 0.0
      %657 = vmatprep.subr.mxu0 0.0
      %658 = vmatpush1.msra.mxu0 %v626
      %659 = vmatprep.subr.mxu0 0.0
      %660 = vmatpush2.msra.mxu0 0.0
      %661 = vmatprep.subr.mxu0 0.0
      %662 = vmatpush2.msra.mxu0 0.0
      %663 = vmatprep.subr.mxu0 0.0
      %664 = vmatpush2.msra.mxu0 0.0
      %665 = vmatprep.subr.mxu0 0.0
      %666 = vmatpush2.msra.mxu0 0.0
      %667 = vmatprep.subr.mxu0 0.0
      %668 = vmatpush2.msra.mxu0 0.0
      %669 = vmatprep.subr.mxu0 0.0
      %670 = vmatpush2.msra.mxu0 0.0
      %671 = vmatprep.subr.mxu0 0.0
      %672 = vmatpush2.msra.mxu0 0.0
      %673 = vmatprep.subr.mxu0 0.0
      %674 = vmatpush2.msra.mxu0 0.0
      %675 = vmatprep.subr.mxu0 0.0
      %676 = vmatpush2.msra.mxu0 0.0
      %677 = vmatprep.subr.mxu0 0.0
      %678 = vmatpush2.msra.mxu0 0.0
      %679 = vmatprep.subr.mxu0 0.0
      %680 = vmatpush2.msra.mxu0 0.0
      %681 = vmatprep.subr.mxu0 0.0
      %682 = vmatpush2.msra.mxu0 0.0
      %683 = vmatprep.subr.mxu0 0.0
      %684 = vmatpush2.msra.mxu0 0.0
      %685 = vmatprep.subr.mxu0 0.0
      %686 = vmatpush2.msra.mxu0 0.0
      %687 = vmatprep.subr.mxu0 0.0
      %688 = vmatpush2.msra.mxu0 0.0
      %689 = vmatprep.subr.mxu0 0.0
      %690 = vmatpush2.msra.mxu0 0.0
      %691 = vmatprep.mubr.f32.mxu0 0.0
      %692 = vmatmul.mubr.f32.gmra.mxu0 %v461
      %v693 = vpop.f32.mrf.mxu0
      %v694 = vadd.f32 0.0, %v693
      %v695 = vpop.f32.mrf.mxu0
      %696 = vdwg.mxu0
      %v697 = vsub.f32 %v694, %v224
      %v698 = vsel %vm209, %v697, -inf
      %699 = vmax.xlane.f32.xlu0 %v698
      %v700 = vpop.xlane.xlu0 %699
      %v701 = vsub.f32 %v697, %v700
      %v702 = vmul.f32 %v701, 1.442695
      %v703 = vpow.pop %v702
      %v704 = vsel %vm209, %v703, 0.0
      %705 = vadd.xlane.f32.xlu0 %v704
      %v706 = vpop.xlane.xlu0 %705
      %v707 = vrcp.pop %v706
      %v708 = vmul.f32 %v703, %v707
      %709 = vmatprep.subr.mxu0 0.0
      %710 = vmatpush1.msra.mxu0 0.0
      %711 = vmatprep.subr.mxu0 0.0
      %712 = vmatpush1.msra.mxu0 0.0
      %713 = vmatprep.subr.mxu0 0.0
      %714 = vmatpush1.msra.mxu0 0.0
      %715 = vmatprep.subr.mxu0 0.0
      %716 = vmatpush1.msra.mxu0 0.0
      %717 = vmatprep.subr.mxu0 0.0
      %718 = vmatpush1.msra.mxu0 0.0
      %719 = vmatprep.subr.mxu0 0.0
      %720 = vmatpush1.msra.mxu0 0.0
      %721 = vmatprep.subr.mxu0 0.0
      %722 = vmatpush1.msra.mxu0 0.0
      %723 = vmatprep.subr.mxu0 0.0
      %724 = vmatpush1.msra.mxu0 0.0
      %725 = vmatprep.subr.mxu0 0.0
      %726 = vmatpush1.msra.mxu0 0.0
      %727 = vmatprep.subr.mxu0 0.0
      %728 = vmatpush1.msra.mxu0 0.0
      %729 = vmatprep.subr.mxu0 0.0
      %730 = vmatpush1.msra.mxu0 0.0
      %731 = vmatprep.subr.mxu0 0.0
      %732 = vmatpush1.msra.mxu0 0.0
      %733 = vmatprep.subr.mxu0 0.0
      %734 = vmatpush1.msra.mxu0 0.0
      %735 = vmatprep.subr.mxu0 0.0
      %736 = vmatpush1.msra.mxu0 0.0
      %737 = vmatprep.subr.mxu0 0.0
      %738 = vmatpush1.msra.mxu0 0.0
      %739 = vmatprep.subr.mxu0 0.0
      %740 = vmatpush1.msra.mxu0 %v708
      %741 = vmatprep.subr.mxu0 0.0
      %742 = vmatpush2.msra.mxu0 0.0
      %743 = vmatprep.subr.mxu0 0.0
      %744 = vmatpush2.msra.mxu0 0.0
      %745 = vmatprep.subr.mxu0 0.0
      %746 = vmatpush2.msra.mxu0 0.0
      %747 = vmatprep.subr.mxu0 0.0
      %748 = vmatpush2.msra.mxu0 0.0
      %749 = vmatprep.subr.mxu0 0.0
      %750 = vmatpush2.msra.mxu0 0.0
      %751 = vmatprep.subr.mxu0 0.0
      %752 = vmatpush2.msra.mxu0 0.0
      %753 = vmatprep.subr.mxu0 0.0
      %754 = vmatpush2.msra.mxu0 0.0
      %755 = vmatprep.subr.mxu0 0.0
      %756 = vmatpush2.msra.mxu0 0.0
      %757 = vmatprep.subr.mxu0 0.0
      %758 = vmatpush2.msra.mxu0 0.0
      %759 = vmatprep.subr.mxu0 0.0
      %760 = vmatpush2.msra.mxu0 0.0
      %761 = vmatprep.subr.mxu0 0.0
      %762 = vmatpush2.msra.mxu0 0.0
      %763 = vmatprep.subr.mxu0 0.0
      %764 = vmatpush2.msra.mxu0 0.0
      %765 = vmatprep.subr.mxu0 0.0
      %766 = vmatpush2.msra.mxu0 0.0
      %767 = vmatprep.subr.mxu0 0.0
      %768 = vmatpush2.msra.mxu0 0.0
      %769 = vmatprep.subr.mxu0 0.0
      %770 = vmatpush2.msra.mxu0 0.0
      %771 = vmatprep.subr.mxu0 0.0
      %772 = vmatpush2.msra.mxu0 0.0
      %773 = vmatprep.mubr.f32.mxu0 0.0
      %774 = vmatmul.mubr.f32.gmra.mxu0 %v461
      %v775 = vpop.f32.mrf.mxu0
      %v776 = vadd.f32 0.0, %v775
      %v777 = vpop.f32.mrf.mxu0
      %778 = vdwg.mxu0
      %v779 = vsub.f32 %v776, %v224
      %v780 = vsel %vm209, %v779, -inf
      %781 = vmax.xlane.f32.xlu0 %v780
      %v782 = vpop.xlane.xlu0 %781
      %v783 = vsub.f32 %v779, %v782
      %v784 = vmul.f32 %v783, 1.442695
      %v785 = vpow.pop %v784
      %v786 = vsel %vm209, %v785, 0.0
      %787 = vadd.xlane.f32.xlu0 %v786
      %v788 = vpop.xlane.xlu0 %787
      %v789 = vrcp.pop %v788
      %v790 = vmul.f32 %v785, %v789
      %v791 = vlog2.pop %v788
      %v792 = vmul.f32 %v791, 0.6931472
      %v793 = vadd.f32 %v782, %v792
      %v794 = vsel %vm417, %v793, 0.0
      %795 = vadd.xlane.f32.xlu0 %v794
      %v796 = vpop.xlane.xlu0 %795
      %v797 = vrot.slane %v796, 4
      %v798 = vadd.f32 %v796, %v797
      %v799 = vrot.slane %v798, 2
      %v800 = vadd.f32 %v798, %v799
      %v801 = vrot.slane %v800, 1
      %v802 = vadd.f32 %v800, %v801
      %s803 = vtos %v802
      %s804 = ssub.f32 0.0, %s803
      %p805 = scmp.ge.s32.totalorder %s453, 1
      %s806 = ssub.f32 %s804, %s455
      %s807 = sand.u32 2147483647, %s806
      %s808 = sand.u32 2147483647, %s455
      %s809 = smul.f32 %s808, 1e-08
      %p810 = scmp.le.f32.partialorder %s807, %s809
      %p811 = pnand %p805, %p810
      %p812 = pneg %p811
      %p813 = pneg %p812
      %s814 = sadd.s32 %s453, 1
      %p815 = scmp.lt.s32.totalorder %s814, 25
      %p816 = pnand %p813, %p815
      %p817 = pneg %p816
    $region18: #{lame_forward.1} parent=1 // loop_footer
      _
    $region19: #{lame_forward.1} parent=1 // loop_footer_branch
      %452 = sbr.rel target = $region15
    $region20: #{lame_forward.1} parent=1 // loop_exit
      _
    %v818 = vsel %vm209, %v454, 0.0
    %819 = vadd.xlane.f32.xlu0 %v818
    %v820 = vpop.xlane.xlu0 %819
    %v821 = vrcp.pop %v820
    %v822 = vmul.f32 %v454, %v821
    %823 = vst.msk [vmem:[#allocation2] sm:$0xff] %vm209, %v822
    // Predicated region
    $region21: #{lame_forward.1} parent=1 // pred_check
      _
    $region22: #{lame_forward.1} parent=1 // pred_check_branch
      %825 = sbr.rel (0) target = $region24
    $region23: #{lame_forward.1} parent=1 // pred_region
      %s827 = ssub.s32 128, 128
      %828 = vsyncadd [#allocation3], %s827
      %s830 = sshll.u32 [#allocation2], 4
      %s831 = int_to_ptr.vmem [resolvable:$true] %s830
      %833 = dma.vmem_to_hbm [thread:$0]  %s831, 128, %s3, [#allocation3]
    $region24: #{lame_forward.1} parent=1 // pred_fallthru
      _
    // Predicated region
    $region25: #{lame_forward.1} parent=1 // pred_check
      _
    $region26: #{lame_forward.1} parent=1 // pred_check_branch
      %835 = sbr.rel (0) target = $region28
    $region27: #{lame_forward.1} parent=1 // pred_region
      %836 = dma.done [#allocation3], 128
    $region28: #{lame_forward.1} parent=1 // pred_fallthru
      _
    %837 = vsyncpa [#allocation3], 1

</llo_original>
